<compile_context>
chip_gen: v6e
topology: v6e:2x2x1
jax: 0.10.0
libtpu: 0.0.40
codegen_flags: <defaults>
</compile_context>

<pallas_src>
import functools

import numpy as np
import jax
import jax.numpy as jnp
from jax.experimental import pallas as pl
from jax.experimental.pallas import tpu as pltpu

BN_EPS = 1e-5


def _round_up(x, m):
    return (x + m - 1) // m * m


def _is_v7x():
    try:
        kind = jax.devices()[0].device_kind.lower()
        return ("v7" in kind) or ("7x" in kind)
    except Exception:  # pragma: no cover
        return False


# --------------------------- Pallas kernel ---------------------------------
def _light_gru_recurrent_kernel(a_ref, u_ref, ts_ref, h_scratch, *,
                                tt, hp, interleave, unroll, dot_dtype):
    """Sequential light-GRU recurrence over one (batch-tile, time-block).

    a_ref    : (TT, TB, 2*HP) f32/bf16  precomputed [BN(x@Wzx^T) | BN(x@Whx^T)]
    u_ref    : (HP, 2*HP)     dot_dtype fused [Uz^T | Uh^T] (zero padded)
    ts_ref   : (TT, TB, HP)   f32       timeseries output block
    h_scratch: (TB, HP)       f32       hidden state carried across time blocks
    """
    tb_idx = pl.program_id(1)          # time-block index (sequential)

    @pl.when(tb_idx == 0)
    def _():
        h_scratch[...] = jnp.zeros_like(h_scratch)

    u = u_ref[...]                     # resident fused recurrent weights

    if interleave:
        # Two independent batch sub-tiles ping-ponged per step: their MXU
        # pushes / EUP sigmoids / VPU gate math hide each other's latency.
        half = h_scratch.shape[0] // 2

        def step(s, carry):
            h0, h1 = carry
            a = a_ref[s].astype(jnp.float32)                       # (TB, 2*HP)
            hu0 = jnp.dot(h0.astype(dot_dtype), u,
                          preferred_element_type=jnp.float32)
            hu1 = jnp.dot(h1.astype(dot_dtype), u,
                          preferred_element_type=jnp.float32)
            pre0 = a[:half] + hu0
            pre1 = a[half:] + hu1
            z0 = jax.nn.sigmoid(pre0[:, :hp])
            z1 = jax.nn.sigmoid(pre1[:, :hp])
            c0 = jnp.maximum(pre0[:, hp:], 0.0)
            c1 = jnp.maximum(pre1[:, hp:], 0.0)
            h0n = c0 + z0 * (h0 - c0)                              # fused gate
            h1n = c1 + z1 * (h1 - c1)
            ts_ref[s, :half] = h0n.astype(ts_ref.dtype)            # lane-dense
            ts_ref[s, half:] = h1n.astype(ts_ref.dtype)
            return (h0n, h1n)

        carry0 = (h_scratch[:half], h_scratch[half:])
        h0l, h1l = jax.lax.fori_loop(0, tt, step, carry0, unroll=unroll)
        h_scratch[:half] = h0l
        h_scratch[half:] = h1l
    else:
        def step(s, h):
            a = a_ref[s].astype(jnp.float32)                       # (TB, 2*HP)
            hu = jnp.dot(h.astype(dot_dtype), u,
                         preferred_element_type=jnp.float32)       # 1 MXU push
            pre = a + hu
            z = jax.nn.sigmoid(pre[:, :hp])                        # update gate
            c = jnp.maximum(pre[:, hp:], 0.0)                      # relu cand.
            h_new = c + z * (h - c)
            ts_ref[s] = h_new.astype(ts_ref.dtype)                 # lane-dense
            return h_new

        h_last = jax.lax.fori_loop(0, tt, step, h_scratch[...], unroll=unroll)
        h_scratch[...] = h_last


# ------------------------------ wrapper -------------------------------------
def light_gru_forward(x, Wzx, Whx, Uz, Uh, gz, bz, gh, bh, *,
                      steps_per_block=16, batch_tile=128, unroll=8,
                      dot_dtype=jnp.bfloat16, interleave_batch_halves=True):
    """x: (T, B, I) f32.  Weights in PyTorch layout: Wzx/Whx (H, I), Uz/Uh (H, H).

    Returns (timeseries (T, B, H), hidden_final (B, H)) like the nn.Module.
    dot_dtype=jnp.float32 reproduces the module numerics (~1e-4);
    dot_dtype=jnp.bfloat16 (default) is the MXU / bandwidth throughput mode.
    """
    x = jnp.asarray(x, jnp.float32)
    T, B, I = x.shape
    H = Wzx.shape[0]
    HP = _round_up(H, 128)

    Wzx = jnp.asarray(Wzx, jnp.float32)
    Whx = jnp.asarray(Whx, jnp.float32)
    Uz = jnp.asarray(Uz, jnp.float32)
    Uh = jnp.asarray(Uh, jnp.float32)
    gz = jnp.asarray(gz, jnp.float32)
    bz = jnp.asarray(bz, jnp.float32)
    gh = jnp.asarray(gh, jnp.float32)
    bh = jnp.asarray(bh, jnp.float32)

    use_bf16 = (jnp.dtype(dot_dtype) == jnp.dtype(jnp.bfloat16))
    a_dtype = jnp.bfloat16 if use_bf16 else jnp.float32

    # ---- hoisted input projection: ONE (T*B, I) @ (I, 2*HP) matmul ---------
    # Weights are padded on the H axis BEFORE the einsum, so the activation is
    # produced directly in its padded layout (no split->pad->concat passes).
    padH = lambda m: jnp.pad(m, ((0, 0), (0, HP - H)))
    w_cat = jnp.concatenate([padH(Wzx.T), padH(Whx.T)], axis=1)      # (I, 2*HP)
    g_cat = jnp.concatenate([jnp.pad(gz, (0, HP - H)),
                             jnp.pad(gh, (0, HP - H))])              # (2*HP,)
    b_cat = jnp.concatenate([jnp.pad(bz, (0, HP - H)),
                             jnp.pad(bh, (0, HP - H))])              # (2*HP,)

    if use_bf16:
        a = jnp.einsum('tbi,ih->tbh', x.astype(jnp.bfloat16),
                       w_cat.astype(jnp.bfloat16),
                       preferred_element_type=jnp.float32)           # (T,B,2HP)
    else:
        a = jnp.einsum('tbi,ih->tbh', x, w_cat,
                       precision=jax.lax.Precision.HIGHEST)

    # ---- hoisted BatchNorm1d (training mode: per-timestep batch stats) -----
    # ONE pass over the fused (T, B, 2*HP) activation, on the UNPADDED batch,
    # in f32 (biased variance, eps=1e-5).  Padded H columns stay exactly 0.
    m = jnp.mean(a, axis=1, keepdims=True)
    var = jnp.mean(jnp.square(a - m), axis=1, keepdims=True)
    a = (a - m) * jax.lax.rsqrt(var + BN_EPS) * g_cat + b_cat

    # ---- tiling -------------------------------------------------------------
    BP8 = _round_up(B, 8)
    # On v7x, guarantee >=2 batch tiles (when sensible) so the "parallel"
    # batch axis can actually shard across the two TensorCores.
    if _is_v7x() and 16 <= BP8 <= 128 and BP8 <= _round_up(batch_tile, 8):
        TB = _round_up((BP8 + 1) // 2, 8)
    else:
        TB = min(_round_up(batch_tile, 8), BP8)
    BP = _round_up(BP8, TB)
    TT = min(steps_per_block, T)
    TP = _round_up(T, TT)
    n_btiles = BP // TB
    n_tblocks = TP // TT
    unroll_eff = max(1, min(unroll, TT))
    # interleaving needs both sub-tiles sublane-aligned (multiples of 8 rows)
    interleave = bool(interleave_batch_halves and TB >= 16 and TB % 16 == 0)

    a_cat = jnp.pad(a, ((0, TP - T), (0, BP - B), (0, 0))).astype(a_dtype)

    pad2 = lambda m2: jnp.pad(m2, ((0, HP - H), (0, HP - H)))
    u_cat = jnp.concatenate([pad2(Uz.T), pad2(Uh.T)], axis=1).astype(dot_dtype)

    # ---- explicit VMEM budget (per-generation cap) --------------------------
    a_item = jnp.dtype(a_dtype).itemsize
    u_item = jnp.dtype(dot_dtype).itemsize
    a_block = TT * TB * 2 * HP * a_item          # double-buffered by pipeline
    ts_block = TT * TB * HP * 4                  # double-buffered by pipeline
    u_block = HP * 2 * HP * u_item               # single-buffered (Buffered(1))
    scratch = TB * HP * 4
    need = 2 * a_block + 2 * ts_block + u_block + scratch
    cap = (48 << 20) if _is_v7x() else (100 << 20)
    vmem_limit = int(min(max(need + need // 4 + (1 << 20), 16 << 20), cap))

    kernel = functools.partial(_light_gru_recurrent_kernel,
                               tt=TT, hp=HP, interleave=interleave,
                               unroll=unroll_eff, dot_dtype=dot_dtype)

    flops = 2 * TP * BP * HP * (2 * HP) + 8 * TP * BP * HP
    bytes_accessed = (TP * BP * 2 * HP * a_item   # a_cat in
                      + HP * 2 * HP * u_item      # fused U (resident)
                      + TP * BP * HP * 4)         # timeseries out

    timeseries_p = pl.pallas_call(
        kernel,
        out_shape=jax.ShapeDtypeStruct((TP, BP, HP), jnp.float32),
        grid_spec=pltpu.PrefetchScalarGridSpec(
            num_scalar_prefetch=0,
            grid=(n_btiles, n_tblocks),
            in_specs=[
                pl.BlockSpec((TT, TB, 2 * HP), lambda bb, tb: (tb, bb, 0)),
                # constant index map -> resident; single-buffer to halve VMEM
                pl.BlockSpec((HP, 2 * HP), lambda bb, tb: (0, 0),
                             pipeline_mode=pl.Buffered(1)),
            ],
            out_specs=pl.BlockSpec((TT, TB, HP), lambda bb, tb: (tb, bb, 0)),
            scratch_shapes=[pltpu.VMEM((TB, HP), jnp.float32)],
        ),
        compiler_params=pltpu.CompilerParams(
            # batch tiles independent (megacore-shardable on v7x); time axis
            # carries the recurrence -> strictly sequential.
            dimension_semantics=("parallel", "arbitrary"),
            vmem_limit_bytes=vmem_limit),
        cost_estimate=pl.CostEstimate(flops=flops,
                                      transcendentals=TP * BP * HP,
                                      bytes_accessed=bytes_accessed),
    )(a_cat, u_cat)

    timeseries = timeseries_p[:T, :B, :H]
    hidden_final = timeseries[T - 1]              # == h after the last real step
    return timeseries, hidden_final


# ---------------- deterministic parameter initialization --------------------
def _xavier_normal(rng, fan_out, fan_in, gain=1.0):
    std = gain * np.sqrt(2.0 / (fan_in + fan_out))
    return rng.standard_normal((fan_out, fan_in)).astype(np.float32) * std


def _kaiming_normal(rng, fan_out, fan_in):
    # mode='fan_in', nonlinearity='relu' -> std = sqrt(2 / fan_in)
    std = np.sqrt(2.0 / fan_in)
    return rng.standard_normal((fan_out, fan_in)).astype(np.float32) * std


def _get_stable_matrix(A):
    ev = np.linalg.eigvals(A.astype(np.float64))
    return (A / np.max(np.abs(ev))).astype(np.float32)


# ------------------------------ reference -----------------------------------
def _reference_forward(x, Wzx, Whx, Uz, Uh, gz, bz, gh, bh):
    """Pure-numpy reference mirroring the PyTorch module (training-mode BN)."""
    T, B, I = x.shape
    H = Wzx.shape[0]
    h = np.zeros((B, H), np.float32)
    outs = []
    for t in range(T):
        xt = x[t]
        az = xt @ Wzx.T
        mz, vz = az.mean(0, keepdims=True), az.var(0, keepdims=True)
        az_bn = (az - mz) / np.sqrt(vz + BN_EPS) * gz + bz
        z = 1.0 / (1.0 + np.exp(-(az_bn + h @ Uz.T)))
        ah = xt @ Whx.T
        mh, vh = ah.mean(0, keepdims=True), ah.var(0, keepdims=True)
        ah_bn = (ah - mh) / np.sqrt(vh + BN_EPS) * gh + bh
        h_un = np.maximum(ah_bn + h @ Uh.T, 0.0)
        h = z * h + (1.0 - z) * h_un
        outs.append(h)
    return np.stack(outs, 0), h


if __name__ == "__main__":
    I, H = 16, 32

    prng = np.random.default_rng(0)
    Wzx = _xavier_normal(prng, H, I)
    Whx = _kaiming_normal(prng, H, I)
    Uz = _get_stable_matrix(_xavier_normal(prng, H, H))
    Uh = _get_stable_matrix(_kaiming_normal(prng, H, H))
    gz = np.ones((H,), np.float32); bz = np.zeros((H,), np.float32)
    gh = np.ones((H,), np.float32); bh = np.zeros((H,), np.float32)

    # ---- Test 1: exact f32 path, small batch (single h carry) --------------
    T1, B1 = 8, 8
    x1 = jax.random.normal(jax.random.PRNGKey(0), (T1, B1, I), dtype=jnp.float32)
    ts_ref1, h_ref1 = _reference_forward(np.asarray(x1), Wzx, Whx, Uz, Uh,
                                         gz, bz, gh, bh)
    fwd_f32 = jax.jit(functools.partial(light_gru_forward,
                                        dot_dtype=jnp.float32))
    ts1, hf1 = fwd_f32(x1, Wzx, Whx, Uz, Uh, gz, bz, gh, bh)
    ts1 = jax.block_until_ready(ts1); hf1 = jax.block_until_ready(hf1)
    np.testing.assert_allclose(np.asarray(ts1), ts_ref1, rtol=1e-4, atol=1e-4)
    np.testing.assert_allclose(np.asarray(hf1), h_ref1, rtol=1e-4, atol=1e-4)

    # ---- Test 2: exact f32 path, batch 32 (exercises interleaved sub-tiles) -
    T2, B2 = 8, 32
    x2 = jax.random.normal(jax.random.PRNGKey(1), (T2, B2, I), dtype=jnp.float32)
    ts_ref2, h_ref2 = _reference_forward(np.asarray(x2), Wzx, Whx, Uz, Uh,
                                         gz, bz, gh, bh)
    ts2, hf2 = fwd_f32(x2, Wzx, Whx, Uz, Uh, gz, bz, gh, bh)
    ts2 = jax.block_until_ready(ts2); hf2 = jax.block_until_ready(hf2)
    np.testing.assert_allclose(np.asarray(ts2), ts_ref2, rtol=1e-4, atol=1e-4)
    np.testing.assert_allclose(np.asarray(hf2), h_ref2, rtol=1e-4, atol=1e-4)

    # ---- Test 3: default bf16 throughput path (loose sanity tolerance) -----
    fwd_bf16 = jax.jit(light_gru_forward)          # dot_dtype=bf16 by default
    ts3, hf3 = fwd_bf16(x2, Wzx, Whx, Uz, Uh, gz, bz, gh, bh)
    ts3 = jax.block_until_ready(ts3); hf3 = jax.block_until_ready(hf3)
    np.testing.assert_allclose(np.asarray(ts3), ts_ref2, rtol=1e-1, atol=1e-1)
    np.testing.assert_allclose(np.asarray(hf3), h_ref2, rtol=1e-1, atol=1e-1)

    print("KERNEL_OK")
</pallas_src>

<mosaic_0001>
module attributes {stable_mosaic.version = 11 : i64} {
  func.func @_light_gru_recurrent_kernel(%arg0: i32, %arg1: i32, %arg2: memref<8x8x256xf32, #tpu.memory_space<vmem>>, %arg3: memref<128x256xf32, #tpu.memory_space<vmem>>, %arg4: memref<8x8x128xf32, #tpu.memory_space<vmem>>, %arg5: memref<8x128xf32, #tpu.memory_space<vmem>>) attributes {dimension_semantics = [#tpu.dimension_semantics<parallel>, #tpu.dimension_semantics<arbitrary>], iteration_bounds = array<i64: 1, 1>, scalar_prefetch = 0 : i64, scratch_operands = 1 : i64, tpu.core_type = #tpu.core_type<tc>, window_params = [{transform_indices = @transform_0, window_bounds = array<i64: 8, 8, 256>}, {pipeline_mode = #tpu.pipeline_mode<synchronous>, transform_indices = @transform_1, window_bounds = array<i64: 128, 256>}, {transform_indices = @transform_2, window_bounds = array<i64: 8, 8, 128>}]} {
    %c0_i32 = arith.constant 0 : i32
    %0 = arith.cmpi eq, %arg1, %c0_i32 : i32
    %1 = arith.extui %0 : i1 to i32
    %c0_i32_0 = arith.constant 0 : i32
    %2 = arith.cmpi ne, %1, %c0_i32_0 : i32
    scf.if %2 {
      %cst_62 = arith.constant 0.000000e+00 : f32
      %174 = vector.broadcast %cst_62 : f32 to vector<8x128xf32>
      %c0_63 = arith.constant 0 : index
      %c0_64 = arith.constant 0 : index
      %175 = vector.load %arg5[%c0_63, %c0_64] : memref<8x128xf32, #tpu.memory_space<vmem>>, vector<8x128xf32>
      tpu.vector_store %arg5[%c0_63, %c0_64], %174 {strides = array<i32>} : memref<8x128xf32, #tpu.memory_space<vmem>>, vector<8x128xf32>,
    } else {
    }
    %c0 = arith.constant 0 : index
    %c0_1 = arith.constant 0 : index
    %3 = vector.load %arg3[%c0, %c0_1] : memref<128x256xf32, #tpu.memory_space<vmem>>, vector<128x256xf32>
    %c0_2 = arith.constant 0 : index
    %c0_3 = arith.constant 0 : index
    %4 = vector.load %arg5[%c0_2, %c0_3] : memref<8x128xf32, #tpu.memory_space<vmem>>, vector<8x128xf32>
    %c0_i32_4 = arith.constant 0 : i32
    %5 = arith.index_cast %c0_i32_4 : i32 to index
    %c0_5 = arith.constant 0 : index
    %c0_6 = arith.constant 0 : index
    %6 = vector.load %arg2[%5, %c0_5, %c0_6] : memref<8x8x256xf32, #tpu.memory_space<vmem>>, vector<1x8x256xf32>
    %7 = vector.shape_cast %6 : vector<1x8x256xf32> to vector<8x256xf32>
    %cst = arith.constant dense<0.000000e+00> : vector<8x256xf32>
    %8 = tpu.matmul %4, %3, %cst {dimension_numbers = #tpu.dot_dimension_numbers<[1], [0], [0], [1], [0, 0, 1, 1], [], []>} : vector<8x128xf32>, vector<128x256xf32>, vector<8x256xf32> -> vector<8x256xf32>
    %9 = arith.addf %7, %8 : vector<8x256xf32>
    %10 = vector.extract_strided_slice %9 {offsets = [0, 0], sizes = [8, 128], strides = [1, 1]} : vector<8x256xf32> to vector<8x128xf32>
    %11 = arith.negf %10 : vector<8x128xf32>
    %12 = math.exp %11 : vector<8x128xf32>
    %cst_7 = arith.constant 1.000000e+00 : f32
    %13 = vector.broadcast %cst_7 : f32 to vector<8x128xf32>
    %14 = arith.addf %13, %12 : vector<8x128xf32>
    %15 = arith.divf %13, %14 : vector<8x128xf32>
    %16 = vector.extract_strided_slice %9 {offsets = [0, 128], sizes = [8, 128], strides = [1, 1]} : vector<8x256xf32> to vector<8x128xf32>
    %cst_8 = arith.constant 0.000000e+00 : f32
    %17 = vector.broadcast %cst_8 : f32 to vector<8x128xf32>
    %18 = arith.maximumf %16, %17 : vector<8x128xf32>
    %19 = arith.subf %4, %18 : vector<8x128xf32>
    %20 = arith.mulf %15, %19 : vector<8x128xf32>
    %21 = arith.addf %18, %20 : vector<8x128xf32>
    %22 = arith.index_cast %c0_i32_4 : i32 to index
    %c0_9 = arith.constant 0 : index
    %c0_10 = arith.constant 0 : index
    %23 = vector.load %arg4[%22, %c0_9, %c0_10] : memref<8x8x128xf32, #tpu.memory_space<vmem>>, vector<1x8x128xf32>
    %24 = vector.shape_cast %23 : vector<1x8x128xf32> to vector<8x128xf32>
    %25 = vector.shape_cast %21 : vector<8x128xf32> to vector<1x8x128xf32>
    tpu.vector_store %arg4[%22, %c0_9, %c0_10], %25 {strides = array<i32>} : memref<8x8x128xf32, #tpu.memory_space<vmem>>, vector<1x8x128xf32>,
    %c1_i32 = arith.constant 1 : i32
    %26 = arith.index_cast %c1_i32 : i32 to index
    %c0_11 = arith.constant 0 : index
    %c0_12 = arith.constant 0 : index
    %27 = vector.load %arg2[%26, %c0_11, %c0_12] : memref<8x8x256xf32, #tpu.memory_space<vmem>>, vector<1x8x256xf32>
    %28 = vector.shape_cast %27 : vector<1x8x256xf32> to vector<8x256xf32>
    %cst_13 = arith.constant dense<0.000000e+00> : vector<8x256xf32>
    %29 = tpu.matmul %21, %3, %cst_13 {dimension_numbers = #tpu.dot_dimension_numbers<[1], [0], [0], [1], [0, 0, 1, 1], [], []>} : vector<8x128xf32>, vector<128x256xf32>, vector<8x256xf32> -> vector<8x256xf32>
    %30 = arith.addf %28, %29 : vector<8x256xf32>
    %31 = vector.extract_strided_slice %30 {offsets = [0, 0], sizes = [8, 128], strides = [1, 1]} : vector<8x256xf32> to vector<8x128xf32>
    %32 = arith.negf %31 : vector<8x128xf32>
    %33 = math.exp %32 : vector<8x128xf32>
    %cst_14 = arith.constant 1.000000e+00 : f32
    %34 = vector.broadcast %cst_14 : f32 to vector<8x128xf32>
    %35 = arith.addf %34, %33 : vector<8x128xf32>
    %36 = arith.divf %34, %35 : vector<8x128xf32>
    %37 = vector.extract_strided_slice %30 {offsets = [0, 128], sizes = [8, 128], strides = [1, 1]} : vector<8x256xf32> to vector<8x128xf32>
    %cst_15 = arith.constant 0.000000e+00 : f32
    %38 = vector.broadcast %cst_15 : f32 to vector<8x128xf32>
    %39 = arith.maximumf %37, %38 : vector<8x128xf32>
    %40 = arith.subf %21, %39 : vector<8x128xf32>
    %41 = arith.mulf %36, %40 : vector<8x128xf32>
    %42 = arith.addf %39, %41 : vector<8x128xf32>
    %43 = arith.index_cast %c1_i32 : i32 to index
    %c0_16 = arith.constant 0 : index
    %c0_17 = arith.constant 0 : index
    %44 = vector.load %arg4[%43, %c0_16, %c0_17] : memref<8x8x128xf32, #tpu.memory_space<vmem>>, vector<1x8x128xf32>
    %45 = vector.shape_cast %44 : vector<1x8x128xf32> to vector<8x128xf32>
    %46 = vector.shape_cast %42 : vector<8x128xf32> to vector<1x8x128xf32>
    tpu.vector_store %arg4[%43, %c0_16, %c0_17], %46 {strides = array<i32>} : memref<8x8x128xf32, #tpu.memory_space<vmem>>, vector<1x8x128xf32>,
    %c2_i32 = arith.constant 2 : i32
    %47 = arith.index_cast %c2_i32 : i32 to index
    %c0_18 = arith.constant 0 : index
    %c0_19 = arith.constant 0 : index
    %48 = vector.load %arg2[%47, %c0_18, %c0_19] : memref<8x8x256xf32, #tpu.memory_space<vmem>>, vector<1x8x256xf32>
    %49 = vector.shape_cast %48 : vector<1x8x256xf32> to vector<8x256xf32>
    %cst_20 = arith.constant dense<0.000000e+00> : vector<8x256xf32>
    %50 = tpu.matmul %42, %3, %cst_20 {dimension_numbers = #tpu.dot_dimension_numbers<[1], [0], [0], [1], [0, 0, 1, 1], [], []>} : vector<8x128xf32>, vector<128x256xf32>, vector<8x256xf32> -> vector<8x256xf32>
    %51 = arith.addf %49, %50 : vector<8x256xf32>
    %52 = vector.extract_strided_slice %51 {offsets = [0, 0], sizes = [8, 128], strides = [1, 1]} : vector<8x256xf32> to vector<8x128xf32>
    %53 = arith.negf %52 : vector<8x128xf32>
    %54 = math.exp %53 : vector<8x128xf32>
    %cst_21 = arith.constant 1.000000e+00 : f32
    %55 = vector.broadcast %cst_21 : f32 to vector<8x128xf32>
    %56 = arith.addf %55, %54 : vector<8x128xf32>
    %57 = arith.divf %55, %56 : vector<8x128xf32>
    %58 = vector.extract_strided_slice %51 {offsets = [0, 128], sizes = [8, 128], strides = [1, 1]} : vector<8x256xf32> to vector<8x128xf32>
    %cst_22 = arith.constant 0.000000e+00 : f32
    %59 = vector.broadcast %cst_22 : f32 to vector<8x128xf32>
    %60 = arith.maximumf %58, %59 : vector<8x128xf32>
    %61 = arith.subf %42, %60 : vector<8x128xf32>
    %62 = arith.mulf %57, %61 : vector<8x128xf32>
    %63 = arith.addf %60, %62 : vector<8x128xf32>
    %64 = arith.index_cast %c2_i32 : i32 to index
    %c0_23 = arith.constant 0 : index
    %c0_24 = arith.constant 0 : index
    %65 = vector.load %arg4[%64, %c0_23, %c0_24] : memref<8x8x128xf32, #tpu.memory_space<vmem>>, vector<1x8x128xf32>
    %66 = vector.shape_cast %65 : vector<1x8x128xf32> to vector<8x128xf32>
    %67 = vector.shape_cast %63 : vector<8x128xf32> to vector<1x8x128xf32>
    tpu.vector_store %arg4[%64, %c0_23, %c0_24], %67 {strides = array<i32>} : memref<8x8x128xf32, #tpu.memory_space<vmem>>, vector<1x8x128xf32>,
    %c3_i32 = arith.constant 3 : i32
    %68 = arith.index_cast %c3_i32 : i32 to index
    %c0_25 = arith.constant 0 : index
    %c0_26 = arith.constant 0 : index
    %69 = vector.load %arg2[%68, %c0_25, %c0_26] : memref<8x8x256xf32, #tpu.memory_space<vmem>>, vector<1x8x256xf32>
    %70 = vector.shape_cast %69 : vector<1x8x256xf32> to vector<8x256xf32>
    %cst_27 = arith.constant dense<0.000000e+00> : vector<8x256xf32>
    %71 = tpu.matmul %63, %3, %cst_27 {dimension_numbers = #tpu.dot_dimension_numbers<[1], [0], [0], [1], [0, 0, 1, 1], [], []>} : vector<8x128xf32>, vector<128x256xf32>, vector<8x256xf32> -> vector<8x256xf32>
    %72 = arith.addf %70, %71 : vector<8x256xf32>
    %73 = vector.extract_strided_slice %72 {offsets = [0, 0], sizes = [8, 128], strides = [1, 1]} : vector<8x256xf32> to vector<8x128xf32>
    %74 = arith.negf %73 : vector<8x128xf32>
    %75 = math.exp %74 : vector<8x128xf32>
    %cst_28 = arith.constant 1.000000e+00 : f32
    %76 = vector.broadcast %cst_28 : f32 to vector<8x128xf32>
    %77 = arith.addf %76, %75 : vector<8x128xf32>
    %78 = arith.divf %76, %77 : vector<8x128xf32>
    %79 = vector.extract_strided_slice %72 {offsets = [0, 128], sizes = [8, 128], strides = [1, 1]} : vector<8x256xf32> to vector<8x128xf32>
    %cst_29 = arith.constant 0.000000e+00 : f32
    %80 = vector.broadcast %cst_29 : f32 to vector<8x128xf32>
    %81 = arith.maximumf %79, %80 : vector<8x128xf32>
    %82 = arith.subf %63, %81 : vector<8x128xf32>
    %83 = arith.mulf %78, %82 : vector<8x128xf32>
    %84 = arith.addf %81, %83 : vector<8x128xf32>
    %85 = arith.index_cast %c3_i32 : i32 to index
    %c0_30 = arith.constant 0 : index
    %c0_31 = arith.constant 0 : index
    %86 = vector.load %arg4[%85, %c0_30, %c0_31] : memref<8x8x128xf32, #tpu.memory_space<vmem>>, vector<1x8x128xf32>
    %87 = vector.shape_cast %86 : vector<1x8x128xf32> to vector<8x128xf32>
    %88 = vector.shape_cast %84 : vector<8x128xf32> to vector<1x8x128xf32>
    tpu.vector_store %arg4[%85, %c0_30, %c0_31], %88 {strides = array<i32>} : memref<8x8x128xf32, #tpu.memory_space<vmem>>, vector<1x8x128xf32>,
    %c4_i32 = arith.constant 4 : i32
    %89 = arith.index_cast %c4_i32 : i32 to index
    %c0_32 = arith.constant 0 : index
    %c0_33 = arith.constant 0 : index
    %90 = vector.load %arg2[%89, %c0_32, %c0_33] : memref<8x8x256xf32, #tpu.memory_space<vmem>>, vector<1x8x256xf32>
    %91 = vector.shape_cast %90 : vector<1x8x256xf32> to vector<8x256xf32>
    %cst_34 = arith.constant dense<0.000000e+00> : vector<8x256xf32>
    %92 = tpu.matmul %84, %3, %cst_34 {dimension_numbers = #tpu.dot_dimension_numbers<[1], [0], [0], [1], [0, 0, 1, 1], [], []>} : vector<8x128xf32>, vector<128x256xf32>, vector<8x256xf32> -> vector<8x256xf32>
    %93 = arith.addf %91, %92 : vector<8x256xf32>
    %94 = vector.extract_strided_slice %93 {offsets = [0, 0], sizes = [8, 128], strides = [1, 1]} : vector<8x256xf32> to vector<8x128xf32>
    %95 = arith.negf %94 : vector<8x128xf32>
    %96 = math.exp %95 : vector<8x128xf32>
    %cst_35 = arith.constant 1.000000e+00 : f32
    %97 = vector.broadcast %cst_35 : f32 to vector<8x128xf32>
    %98 = arith.addf %97, %96 : vector<8x128xf32>
    %99 = arith.divf %97, %98 : vector<8x128xf32>
    %100 = vector.extract_strided_slice %93 {offsets = [0, 128], sizes = [8, 128], strides = [1, 1]} : vector<8x256xf32> to vector<8x128xf32>
    %cst_36 = arith.constant 0.000000e+00 : f32
    %101 = vector.broadcast %cst_36 : f32 to vector<8x128xf32>
    %102 = arith.maximumf %100, %101 : vector<8x128xf32>
    %103 = arith.subf %84, %102 : vector<8x128xf32>
    %104 = arith.mulf %99, %103 : vector<8x128xf32>
    %105 = arith.addf %102, %104 : vector<8x128xf32>
    %106 = arith.index_cast %c4_i32 : i32 to index
    %c0_37 = arith.constant 0 : index
    %c0_38 = arith.constant 0 : index
    %107 = vector.load %arg4[%106, %c0_37, %c0_38] : memref<8x8x128xf32, #tpu.memory_space<vmem>>, vector<1x8x128xf32>
    %108 = vector.shape_cast %107 : vector<1x8x128xf32> to vector<8x128xf32>
    %109 = vector.shape_cast %105 : vector<8x128xf32> to vector<1x8x128xf32>
    tpu.vector_store %arg4[%106, %c0_37, %c0_38], %109 {strides = array<i32>} : memref<8x8x128xf32, #tpu.memory_space<vmem>>, vector<1x8x128xf32>,
    %c5_i32 = arith.constant 5 : i32
    %110 = arith.index_cast %c5_i32 : i32 to index
    %c0_39 = arith.constant 0 : index
    %c0_40 = arith.constant 0 : index
    %111 = vector.load %arg2[%110, %c0_39, %c0_40] : memref<8x8x256xf32, #tpu.memory_space<vmem>>, vector<1x8x256xf32>
    %112 = vector.shape_cast %111 : vector<1x8x256xf32> to vector<8x256xf32>
    %cst_41 = arith.constant dense<0.000000e+00> : vector<8x256xf32>
    %113 = tpu.matmul %105, %3, %cst_41 {dimension_numbers = #tpu.dot_dimension_numbers<[1], [0], [0], [1], [0, 0, 1, 1], [], []>} : vector<8x128xf32>, vector<128x256xf32>, vector<8x256xf32> -> vector<8x256xf32>
    %114 = arith.addf %112, %113 : vector<8x256xf32>
    %115 = vector.extract_strided_slice %114 {offsets = [0, 0], sizes = [8, 128], strides = [1, 1]} : vector<8x256xf32> to vector<8x128xf32>
    %116 = arith.negf %115 : vector<8x128xf32>
    %117 = math.exp %116 : vector<8x128xf32>
    %cst_42 = arith.constant 1.000000e+00 : f32
    %118 = vector.broadcast %cst_42 : f32 to vector<8x128xf32>
    %119 = arith.addf %118, %117 : vector<8x128xf32>
    %120 = arith.divf %118, %119 : vector<8x128xf32>
    %121 = vector.extract_strided_slice %114 {offsets = [0, 128], sizes = [8, 128], strides = [1, 1]} : vector<8x256xf32> to vector<8x128xf32>
    %cst_43 = arith.constant 0.000000e+00 : f32
    %122 = vector.broadcast %cst_43 : f32 to vector<8x128xf32>
    %123 = arith.maximumf %121, %122 : vector<8x128xf32>
    %124 = arith.subf %105, %123 : vector<8x128xf32>
    %125 = arith.mulf %120, %124 : vector<8x128xf32>
    %126 = arith.addf %123, %125 : vector<8x128xf32>
    %127 = arith.index_cast %c5_i32 : i32 to index
    %c0_44 = arith.constant 0 : index
    %c0_45 = arith.constant 0 : index
    %128 = vector.load %arg4[%127, %c0_44, %c0_45] : memref<8x8x128xf32, #tpu.memory_space<vmem>>, vector<1x8x128xf32>
    %129 = vector.shape_cast %128 : vector<1x8x128xf32> to vector<8x128xf32>
    %130 = vector.shape_cast %126 : vector<8x128xf32> to vector<1x8x128xf32>
    tpu.vector_store %arg4[%127, %c0_44, %c0_45], %130 {strides = array<i32>} : memref<8x8x128xf32, #tpu.memory_space<vmem>>, vector<1x8x128xf32>,
    %c6_i32 = arith.constant 6 : i32
    %131 = arith.index_cast %c6_i32 : i32 to index
    %c0_46 = arith.constant 0 : index
    %c0_47 = arith.constant 0 : index
    %132 = vector.load %arg2[%131, %c0_46, %c0_47] : memref<8x8x256xf32, #tpu.memory_space<vmem>>, vector<1x8x256xf32>
    %133 = vector.shape_cast %132 : vector<1x8x256xf32> to vector<8x256xf32>
    %cst_48 = arith.constant dense<0.000000e+00> : vector<8x256xf32>
    %134 = tpu.matmul %126, %3, %cst_48 {dimension_numbers = #tpu.dot_dimension_numbers<[1], [0], [0], [1], [0, 0, 1, 1], [], []>} : vector<8x128xf32>, vector<128x256xf32>, vector<8x256xf32> -> vector<8x256xf32>
    %135 = arith.addf %133, %134 : vector<8x256xf32>
    %136 = vector.extract_strided_slice %135 {offsets = [0, 0], sizes = [8, 128], strides = [1, 1]} : vector<8x256xf32> to vector<8x128xf32>
    %137 = arith.negf %136 : vector<8x128xf32>
    %138 = math.exp %137 : vector<8x128xf32>
    %cst_49 = arith.constant 1.000000e+00 : f32
    %139 = vector.broadcast %cst_49 : f32 to vector<8x128xf32>
    %140 = arith.addf %139, %138 : vector<8x128xf32>
    %141 = arith.divf %139, %140 : vector<8x128xf32>
    %142 = vector.extract_strided_slice %135 {offsets = [0, 128], sizes = [8, 128], strides = [1, 1]} : vector<8x256xf32> to vector<8x128xf32>
    %cst_50 = arith.constant 0.000000e+00 : f32
    %143 = vector.broadcast %cst_50 : f32 to vector<8x128xf32>
    %144 = arith.maximumf %142, %143 : vector<8x128xf32>
    %145 = arith.subf %126, %144 : vector<8x128xf32>
    %146 = arith.mulf %141, %145 : vector<8x128xf32>
    %147 = arith.addf %144, %146 : vector<8x128xf32>
    %148 = arith.index_cast %c6_i32 : i32 to index
    %c0_51 = arith.constant 0 : index
    %c0_52 = arith.constant 0 : index
    %149 = vector.load %arg4[%148, %c0_51, %c0_52] : memref<8x8x128xf32, #tpu.memory_space<vmem>>, vector<1x8x128xf32>
    %150 = vector.shape_cast %149 : vector<1x8x128xf32> to vector<8x128xf32>
    %151 = vector.shape_cast %147 : vector<8x128xf32> to vector<1x8x128xf32>
    tpu.vector_store %arg4[%148, %c0_51, %c0_52], %151 {strides = array<i32>} : memref<8x8x128xf32, #tpu.memory_space<vmem>>, vector<1x8x128xf32>,
    %c7_i32 = arith.constant 7 : i32
    %152 = arith.index_cast %c7_i32 : i32 to index
    %c0_53 = arith.constant 0 : index
    %c0_54 = arith.constant 0 : index
    %153 = vector.load %arg2[%152, %c0_53, %c0_54] : memref<8x8x256xf32, #tpu.memory_space<vmem>>, vector<1x8x256xf32>
    %154 = vector.shape_cast %153 : vector<1x8x256xf32> to vector<8x256xf32>
    %cst_55 = arith.constant dense<0.000000e+00> : vector<8x256xf32>
    %155 = tpu.matmul %147, %3, %cst_55 {dimension_numbers = #tpu.dot_dimension_numbers<[1], [0], [0], [1], [0, 0, 1, 1], [], []>} : vector<8x128xf32>, vector<128x256xf32>, vector<8x256xf32> -> vector<8x256xf32>
    %156 = arith.addf %154, %155 : vector<8x256xf32>
    %157 = vector.extract_strided_slice %156 {offsets = [0, 0], sizes = [8, 128], strides = [1, 1]} : vector<8x256xf32> to vector<8x128xf32>
    %158 = arith.negf %157 : vector<8x128xf32>
    %159 = math.exp %158 : vector<8x128xf32>
    %cst_56 = arith.constant 1.000000e+00 : f32
    %160 = vector.broadcast %cst_56 : f32 to vector<8x128xf32>
    %161 = arith.addf %160, %159 : vector<8x128xf32>
    %162 = arith.divf %160, %161 : vector<8x128xf32>
    %163 = vector.extract_strided_slice %156 {offsets = [0, 128], sizes = [8, 128], strides = [1, 1]} : vector<8x256xf32> to vector<8x128xf32>
    %cst_57 = arith.constant 0.000000e+00 : f32
    %164 = vector.broadcast %cst_57 : f32 to vector<8x128xf32>
    %165 = arith.maximumf %163, %164 : vector<8x128xf32>
    %166 = arith.subf %147, %165 : vector<8x128xf32>
    %167 = arith.mulf %162, %166 : vector<8x128xf32>
    %168 = arith.addf %165, %167 : vector<8x128xf32>
    %169 = arith.index_cast %c7_i32 : i32 to index
    %c0_58 = arith.constant 0 : index
    %c0_59 = arith.constant 0 : index
    %170 = vector.load %arg4[%169, %c0_58, %c0_59] : memref<8x8x128xf32, #tpu.memory_space<vmem>>, vector<1x8x128xf32>
    %171 = vector.shape_cast %170 : vector<1x8x128xf32> to vector<8x128xf32>
    %172 = vector.shape_cast %168 : vector<8x128xf32> to vector<1x8x128xf32>
    tpu.vector_store %arg4[%169, %c0_58, %c0_59], %172 {strides = array<i32>} : memref<8x8x128xf32, #tpu.memory_space<vmem>>, vector<1x8x128xf32>,
    %c8_i32 = arith.constant 8 : i32
    %c0_60 = arith.constant 0 : index
    %c0_61 = arith.constant 0 : index
    %173 = vector.load %arg5[%c0_60, %c0_61] : memref<8x128xf32, #tpu.memory_space<vmem>>, vector<8x128xf32>
    tpu.vector_store %arg5[%c0_60, %c0_61], %168 {strides = array<i32>} : memref<8x128xf32, #tpu.memory_space<vmem>>, vector<8x128xf32>,
    return
  }
  func.func @transform_0(%arg0: i32, %arg1: i32) -> (i32, i32, i32) {
    %c0_i32 = arith.constant 0 : i32
    %c0_i32_0 = arith.constant 0 : i32
    return %arg1, %arg0, %c0_i32 : i32, i32, i32
  }
  func.func @transform_1(%arg0: i32, %arg1: i32) -> (i32, i32) {
    %c0_i32 = arith.constant 0 : i32
    %c0_i32_0 = arith.constant 0 : i32
    %c0_i32_1 = arith.constant 0 : i32
    return %c0_i32, %c0_i32_0 : i32, i32
  }
  func.func @transform_2(%arg0: i32, %arg1: i32) -> (i32, i32, i32) {
    %c0_i32 = arith.constant 0 : i32
    %c0_i32_0 = arith.constant 0 : i32
    return %arg1, %arg0, %c0_i32 : i32, i32, i32
  }
}

</mosaic_0001>

<llo_original>
// kernel: light_gru_forward.1
$region0: #{light_gru_forward.1}
  #allocation0 [shape = 'u32[]', space=smem, size = 0x4, offset = 0x4, fixed_abs, tag = 'smem constant byte address 0x4 - core index']
  #allocation1 [shape = 'u32[144,128]{1,0:T(1,128)}', space=vmem, size = 0x12000, scoped, tag = 'internal scratch']
  #allocation2 [shape = 'f32[8,128]{1,0:T(8,128)}', space=vmem, size = 0x1000, scoped, tag = 'scratch operand']
  %s0 = inlined_call_operand.vmem [shape: f32[8,8,256], index: 0, kind: input, shape index: {}]
  %s1 = inlined_call_operand.vmem [shape: f32[128,256], index: 1, kind: input, shape index: {}]
  %s2 = inlined_call_operand.vmem [shape: f32[8,8,128], index: 2, kind: output, shape index: {}]
  %s3 = sld [smem:[#allocation0]]
  $region22: #{light_gru_forward.1} parent=0
    _
  %s5 = ssub.s32 1, %s3
  %s6 = scalar_select 0, %s5, %s3
  // Predicated region
  $region2: #{light_gru_forward.1} parent=0 // pred_check
    _
  $region3: #{light_gru_forward.1} parent=0 // pred_check_branch
    %8 = sbr.rel (0) target = $region5
  $region4: #{light_gru_forward.1} parent=0 // pred_region
    _
  $region5: #{light_gru_forward.1} parent=0 // pred_fallthru
    _
  // Predicated region
  $region6: #{light_gru_forward.1} parent=0 // pred_check
    _
  $region7: #{light_gru_forward.1} parent=0 // pred_check_branch
    %10 = sbr.rel (0) target = $region9
  $region8: #{light_gru_forward.1} parent=0 // pred_region
    _
  $region9: #{light_gru_forward.1} parent=0 // pred_fallthru
    _
  %p11 = scmp.eq.s32.totalorder 0, 0
  // Predicated region
  $region10: #{light_gru_forward.1} parent=0 // pred_check
    %p12 = pneg %p11
  $region11: #{light_gru_forward.1} parent=0 // pred_check_branch
    %14 = sbr.rel (%p12) target = $region13
  $region12: #{light_gru_forward.1} parent=0 // pred_region
    %15 = vst [vmem:[#allocation2] sm:$0xff] 0.0
  $region13: #{light_gru_forward.1} parent=0 // pred_fallthru
    _
  %v16 = vld [vmem:[%s1] sm:$0xff]
  %v17 = vld [vmem:[%s1 + $0x8] sm:$0xff]
  %v18 = vld [vmem:[%s1 + $0x10] sm:$0xff]
  %v19 = vld [vmem:[%s1 + $0x18] sm:$0xff]
  %v20 = vld [vmem:[%s1 + $0x20] sm:$0xff]
  %v21 = vld [vmem:[%s1 + $0x28] sm:$0xff]
  %v22 = vld [vmem:[%s1 + $0x30] sm:$0xff]
  %v23 = vld [vmem:[%s1 + $0x38] sm:$0xff]
  %v24 = vld [vmem:[%s1 + $0x40] sm:$0xff]
  %v25 = vld [vmem:[%s1 + $0x48] sm:$0xff]
  %v26 = vld [vmem:[%s1 + $0x50] sm:$0xff]
  %v27 = vld [vmem:[%s1 + $0x58] sm:$0xff]
  %v28 = vld [vmem:[%s1 + $0x60] sm:$0xff]
  %v29 = vld [vmem:[%s1 + $0x68] sm:$0xff]
  %v30 = vld [vmem:[%s1 + $0x70] sm:$0xff]
  %v31 = vld [vmem:[%s1 + $0x78] sm:$0xff]
  %v32 = vld [vmem:[%s1 + $0x80] sm:$0xff]
  %v33 = vld [vmem:[%s1 + $0x88] sm:$0xff]
  %v34 = vld [vmem:[%s1 + $0x90] sm:$0xff]
  %v35 = vld [vmem:[%s1 + $0x98] sm:$0xff]
  %v36 = vld [vmem:[%s1 + $0xa0] sm:$0xff]
  %v37 = vld [vmem:[%s1 + $0xa8] sm:$0xff]
  %v38 = vld [vmem:[%s1 + $0xb0] sm:$0xff]
  %v39 = vld [vmem:[%s1 + $0xb8] sm:$0xff]
  %v40 = vld [vmem:[%s1 + $0xc0] sm:$0xff]
  %v41 = vld [vmem:[%s1 + $0xc8] sm:$0xff]
  %v42 = vld [vmem:[%s1 + $0xd0] sm:$0xff]
  %v43 = vld [vmem:[%s1 + $0xd8] sm:$0xff]
  %v44 = vld [vmem:[%s1 + $0xe0] sm:$0xff]
  %v45 = vld [vmem:[%s1 + $0xe8] sm:$0xff]
  %v46 = vld [vmem:[%s1 + $0xf0] sm:$0xff]
  %v47 = vld [vmem:[%s1 + $0xf8] sm:$0xff]
  %v48 = vld [vmem:[#allocation2] sm:$0xff]
  %v49 = vld [vmem:[%s0] sm:$0xff]
  %v50 = vld [vmem:[%s0 + $0x8] sm:$0xff]
  %51 = vmatprep.subr.mxu0 %v47
  %52 = vmatpush1.msra.mxu0 %v46
  %53 = vmatprep.subr.mxu0 %v45
  %54 = vmatpush1.msra.mxu0 %v44
  %55 = vmatprep.subr.mxu0 %v43
  %56 = vmatpush1.msra.mxu0 %v42
  %57 = vmatprep.subr.mxu0 %v41
  %58 = vmatpush1.msra.mxu0 %v40
  %59 = vmatprep.subr.mxu0 %v39
  %60 = vmatpush1.msra.mxu0 %v38
  %61 = vmatprep.subr.mxu0 %v37
  %62 = vmatpush1.msra.mxu0 %v36
  %63 = vmatprep.subr.mxu0 %v35
  %64 = vmatpush1.msra.mxu0 %v34
  %65 = vmatprep.subr.mxu0 %v33
  %66 = vmatpush1.msra.mxu0 %v32
  %67 = vmatprep.subr.mxu0 %v31
  %68 = vmatpush1.msra.mxu0 %v30
  %69 = vmatprep.subr.mxu0 %v29
  %70 = vmatpush1.msra.mxu0 %v28
  %71 = vmatprep.subr.mxu0 %v27
  %72 = vmatpush1.msra.mxu0 %v26
  %73 = vmatprep.subr.mxu0 %v25
  %74 = vmatpush1.msra.mxu0 %v24
  %75 = vmatprep.subr.mxu0 %v23
  %76 = vmatpush1.msra.mxu0 %v22
  %77 = vmatprep.subr.mxu0 %v21
  %78 = vmatpush1.msra.mxu0 %v20
  %79 = vmatprep.subr.mxu0 %v19
  %80 = vmatpush1.msra.mxu0 %v18
  %81 = vmatprep.subr.mxu0 %v17
  %82 = vmatpush1.msra.mxu0 %v16
  %83 = vmatprep.subr.mxu0 0.0
  %84 = vmatpush2.msra.mxu0 0.0
  %85 = vmatprep.subr.mxu0 0.0
  %86 = vmatpush2.msra.mxu0 0.0
  %87 = vmatprep.subr.mxu0 0.0
  %88 = vmatpush2.msra.mxu0 0.0
  %89 = vmatprep.subr.mxu0 0.0
  %90 = vmatpush2.msra.mxu0 0.0
  %91 = vmatprep.subr.mxu0 0.0
  %92 = vmatpush2.msra.mxu0 0.0
  %93 = vmatprep.subr.mxu0 0.0
  %94 = vmatpush2.msra.mxu0 0.0
  %95 = vmatprep.subr.mxu0 0.0
  %96 = vmatpush2.msra.mxu0 0.0
  %97 = vmatprep.subr.mxu0 0.0
  %98 = vmatpush2.msra.mxu0 0.0
  %99 = vmatprep.subr.mxu0 0.0
  %100 = vmatpush2.msra.mxu0 0.0
  %101 = vmatprep.subr.mxu0 0.0
  %102 = vmatpush2.msra.mxu0 0.0
  %103 = vmatprep.subr.mxu0 0.0
  %104 = vmatpush2.msra.mxu0 0.0
  %105 = vmatprep.subr.mxu0 0.0
  %106 = vmatpush2.msra.mxu0 0.0
  %107 = vmatprep.subr.mxu0 0.0
  %108 = vmatpush2.msra.mxu0 0.0
  %109 = vmatprep.subr.mxu0 0.0
  %110 = vmatpush2.msra.mxu0 0.0
  %111 = vmatprep.subr.mxu0 0.0
  %112 = vmatpush2.msra.mxu0 0.0
  %113 = vmatprep.subr.mxu0 0.0
  %114 = vmatpush2.msra.mxu0 0.0
  %115 = vmatprep.mubr.f32.mxu0 0.0
  %116 = vmatmul.mubr.f32.gmra.mxu0 %v48
  %v117 = vpop.f32.mrf.mxu0
  %v118 = vadd.f32 0.0, %v117
  %v119 = vpop.f32.mrf.mxu0
  %v120 = vadd.f32 0.0, %v119
  %121 = vdwg.mxu0
  %v122 = vadd.f32 %v49, %v118
  %v123 = vadd.f32 %v50, %v120
  %v124 = vxor.u32 %v122, 2147483648
  %v125 = vmul.f32 %v124, 1.442695
  %v126 = vpow.pop %v125
  %v127 = vadd.f32 %v126, 1.0
  %v128 = vrcp.pop %v127
  %v129 = vmul.f32 1.0, %v128
  %v130 = vmax.f32 %v123, 0.0
  %v131 = vsub.f32 %v48, %v130
  %v132 = vmul.f32 %v129, %v131
  %v133 = vadd.f32 %v130, %v132
  %134 = vst [vmem:[%s2] sm:$0xff] %v133
  %s135 = scalar_lea.vmem %s0, 16
  %v136 = vld [vmem:[%s135] sm:$0xff]
  %v137 = vld [vmem:[%s135 + $0x8] sm:$0xff]
  %138 = vmatprep.subr.mxu0 %v47
  %139 = vmatpush1.msra.mxu0 %v46
  %140 = vmatprep.subr.mxu0 %v45
  %141 = vmatpush1.msra.mxu0 %v44
  %142 = vmatprep.subr.mxu0 %v43
  %143 = vmatpush1.msra.mxu0 %v42
  %144 = vmatprep.subr.mxu0 %v41
  %145 = vmatpush1.msra.mxu0 %v40
  %146 = vmatprep.subr.mxu0 %v39
  %147 = vmatpush1.msra.mxu0 %v38
  %148 = vmatprep.subr.mxu0 %v37
  %149 = vmatpush1.msra.mxu0 %v36
  %150 = vmatprep.subr.mxu0 %v35
  %151 = vmatpush1.msra.mxu0 %v34
  %152 = vmatprep.subr.mxu0 %v33
  %153 = vmatpush1.msra.mxu0 %v32
  %154 = vmatprep.subr.mxu0 %v31
  %155 = vmatpush1.msra.mxu0 %v30
  %156 = vmatprep.subr.mxu0 %v29
  %157 = vmatpush1.msra.mxu0 %v28
  %158 = vmatprep.subr.mxu0 %v27
  %159 = vmatpush1.msra.mxu0 %v26
  %160 = vmatprep.subr.mxu0 %v25
  %161 = vmatpush1.msra.mxu0 %v24
  %162 = vmatprep.subr.mxu0 %v23
  %163 = vmatpush1.msra.mxu0 %v22
  %164 = vmatprep.subr.mxu0 %v21
  %165 = vmatpush1.msra.mxu0 %v20
  %166 = vmatprep.subr.mxu0 %v19
  %167 = vmatpush1.msra.mxu0 %v18
  %168 = vmatprep.subr.mxu0 %v17
  %169 = vmatpush1.msra.mxu0 %v16
  %170 = vmatprep.subr.mxu0 0.0
  %171 = vmatpush2.msra.mxu0 0.0
  %172 = vmatprep.subr.mxu0 0.0
  %173 = vmatpush2.msra.mxu0 0.0
  %174 = vmatprep.subr.mxu0 0.0
  %175 = vmatpush2.msra.mxu0 0.0
  %176 = vmatprep.subr.mxu0 0.0
  %177 = vmatpush2.msra.mxu0 0.0
  %178 = vmatprep.subr.mxu0 0.0
  %179 = vmatpush2.msra.mxu0 0.0
  %180 = vmatprep.subr.mxu0 0.0
  %181 = vmatpush2.msra.mxu0 0.0
  %182 = vmatprep.subr.mxu0 0.0
  %183 = vmatpush2.msra.mxu0 0.0
  %184 = vmatprep.subr.mxu0 0.0
  %185 = vmatpush2.msra.mxu0 0.0
  %186 = vmatprep.subr.mxu0 0.0
  %187 = vmatpush2.msra.mxu0 0.0
  %188 = vmatprep.subr.mxu0 0.0
  %189 = vmatpush2.msra.mxu0 0.0
  %190 = vmatprep.subr.mxu0 0.0
  %191 = vmatpush2.msra.mxu0 0.0
  %192 = vmatprep.subr.mxu0 0.0
  %193 = vmatpush2.msra.mxu0 0.0
  %194 = vmatprep.subr.mxu0 0.0
  %195 = vmatpush2.msra.mxu0 0.0
  %196 = vmatprep.subr.mxu0 0.0
  %197 = vmatpush2.msra.mxu0 0.0
  %198 = vmatprep.subr.mxu0 0.0
  %199 = vmatpush2.msra.mxu0 0.0
  %200 = vmatprep.subr.mxu0 0.0
  %201 = vmatpush2.msra.mxu0 0.0
  %202 = vmatprep.mubr.f32.mxu0 0.0
  %203 = vmatmul.mubr.f32.gmra.mxu0 %v133
  %v204 = vpop.f32.mrf.mxu0
  %v205 = vadd.f32 0.0, %v204
  %v206 = vpop.f32.mrf.mxu0
  %v207 = vadd.f32 0.0, %v206
  %208 = vdwg.mxu0
  %v209 = vadd.f32 %v136, %v205
  %v210 = vadd.f32 %v137, %v207
  %v211 = vxor.u32 %v209, 2147483648
  %v212 = vmul.f32 %v211, 1.442695
  %v213 = vpow.pop %v212
  %v214 = vadd.f32 %v213, 1.0
  %v215 = vrcp.pop %v214
  %v216 = vmul.f32 1.0, %v215
  %v217 = vmax.f32 %v210, 0.0
  %v218 = vsub.f32 %v133, %v217
  %v219 = vmul.f32 %v216, %v218
  %v220 = vadd.f32 %v217, %v219
  %s221 = scalar_lea.vmem %s2, 8
  %222 = vst [vmem:[%s221] sm:$0xff] %v220
  %s223 = scalar_lea.vmem %s0, 32
  %v224 = vld [vmem:[%s223] sm:$0xff]
  %v225 = vld [vmem:[%s223 + $0x8] sm:$0xff]
  %226 = vmatprep.subr.mxu0 %v47
  %227 = vmatpush1.msra.mxu0 %v46
  %228 = vmatprep.subr.mxu0 %v45
  %229 = vmatpush1.msra.mxu0 %v44
  %230 = vmatprep.subr.mxu0 %v43
  %231 = vmatpush1.msra.mxu0 %v42
  %232 = vmatprep.subr.mxu0 %v41
  %233 = vmatpush1.msra.mxu0 %v40
  %234 = vmatprep.subr.mxu0 %v39
  %235 = vmatpush1.msra.mxu0 %v38
  %236 = vmatprep.subr.mxu0 %v37
  %237 = vmatpush1.msra.mxu0 %v36
  %238 = vmatprep.subr.mxu0 %v35
  %239 = vmatpush1.msra.mxu0 %v34
  %240 = vmatprep.subr.mxu0 %v33
  %241 = vmatpush1.msra.mxu0 %v32
  %242 = vmatprep.subr.mxu0 %v31
  %243 = vmatpush1.msra.mxu0 %v30
  %244 = vmatprep.subr.mxu0 %v29
  %245 = vmatpush1.msra.mxu0 %v28
  %246 = vmatprep.subr.mxu0 %v27
  %247 = vmatpush1.msra.mxu0 %v26
  %248 = vmatprep.subr.mxu0 %v25
  %249 = vmatpush1.msra.mxu0 %v24
  %250 = vmatprep.subr.mxu0 %v23
  %251 = vmatpush1.msra.mxu0 %v22
  %252 = vmatprep.subr.mxu0 %v21
  %253 = vmatpush1.msra.mxu0 %v20
  %254 = vmatprep.subr.mxu0 %v19
  %255 = vmatpush1.msra.mxu0 %v18
  %256 = vmatprep.subr.mxu0 %v17
  %257 = vmatpush1.msra.mxu0 %v16
  %258 = vmatprep.subr.mxu0 0.0
  %259 = vmatpush2.msra.mxu0 0.0
  %260 = vmatprep.subr.mxu0 0.0
  %261 = vmatpush2.msra.mxu0 0.0
  %262 = vmatprep.subr.mxu0 0.0
  %263 = vmatpush2.msra.mxu0 0.0
  %264 = vmatprep.subr.mxu0 0.0
  %265 = vmatpush2.msra.mxu0 0.0
  %266 = vmatprep.subr.mxu0 0.0
  %267 = vmatpush2.msra.mxu0 0.0
  %268 = vmatprep.subr.mxu0 0.0
  %269 = vmatpush2.msra.mxu0 0.0
  %270 = vmatprep.subr.mxu0 0.0
  %271 = vmatpush2.msra.mxu0 0.0
  %272 = vmatprep.subr.mxu0 0.0
  %273 = vmatpush2.msra.mxu0 0.0
  %274 = vmatprep.subr.mxu0 0.0
  %275 = vmatpush2.msra.mxu0 0.0
  %276 = vmatprep.subr.mxu0 0.0
  %277 = vmatpush2.msra.mxu0 0.0
  %278 = vmatprep.subr.mxu0 0.0
  %279 = vmatpush2.msra.mxu0 0.0
  %280 = vmatprep.subr.mxu0 0.0
  %281 = vmatpush2.msra.mxu0 0.0
  %282 = vmatprep.subr.mxu0 0.0
  %283 = vmatpush2.msra.mxu0 0.0
  %284 = vmatprep.subr.mxu0 0.0
  %285 = vmatpush2.msra.mxu0 0.0
  %286 = vmatprep.subr.mxu0 0.0
  %287 = vmatpush2.msra.mxu0 0.0
  %288 = vmatprep.subr.mxu0 0.0
  %289 = vmatpush2.msra.mxu0 0.0
  %290 = vmatprep.mubr.f32.mxu0 0.0
  %291 = vmatmul.mubr.f32.gmra.mxu0 %v220
  %v292 = vpop.f32.mrf.mxu0
  %v293 = vadd.f32 0.0, %v292
  %v294 = vpop.f32.mrf.mxu0
  %v295 = vadd.f32 0.0, %v294
  %296 = vdwg.mxu0
  %v297 = vadd.f32 %v224, %v293
  %v298 = vadd.f32 %v225, %v295
  %v299 = vxor.u32 %v297, 2147483648
  %v300 = vmul.f32 %v299, 1.442695
  %v301 = vpow.pop %v300
  %v302 = vadd.f32 %v301, 1.0
  %v303 = vrcp.pop %v302
  %v304 = vmul.f32 1.0, %v303
  %v305 = vmax.f32 %v298, 0.0
  %v306 = vsub.f32 %v220, %v305
  %v307 = vmul.f32 %v304, %v306
  %v308 = vadd.f32 %v305, %v307
  %s309 = scalar_lea.vmem %s2, 16
  %310 = vst [vmem:[%s309] sm:$0xff] %v308
  %s311 = scalar_lea.vmem %s0, 48
  %v312 = vld [vmem:[%s311] sm:$0xff]
  %v313 = vld [vmem:[%s311 + $0x8] sm:$0xff]
  %314 = vmatprep.subr.mxu0 %v47
  %315 = vmatpush1.msra.mxu0 %v46
  %316 = vmatprep.subr.mxu0 %v45
  %317 = vmatpush1.msra.mxu0 %v44
  %318 = vmatprep.subr.mxu0 %v43
  %319 = vmatpush1.msra.mxu0 %v42
  %320 = vmatprep.subr.mxu0 %v41
  %321 = vmatpush1.msra.mxu0 %v40
  %322 = vmatprep.subr.mxu0 %v39
  %323 = vmatpush1.msra.mxu0 %v38
  %324 = vmatprep.subr.mxu0 %v37
  %325 = vmatpush1.msra.mxu0 %v36
  %326 = vmatprep.subr.mxu0 %v35
  %327 = vmatpush1.msra.mxu0 %v34
  %328 = vmatprep.subr.mxu0 %v33
  %329 = vmatpush1.msra.mxu0 %v32
  %330 = vmatprep.subr.mxu0 %v31
  %331 = vmatpush1.msra.mxu0 %v30
  %332 = vmatprep.subr.mxu0 %v29
  %333 = vmatpush1.msra.mxu0 %v28
  %334 = vmatprep.subr.mxu0 %v27
  %335 = vmatpush1.msra.mxu0 %v26
  %336 = vmatprep.subr.mxu0 %v25
  %337 = vmatpush1.msra.mxu0 %v24
  %338 = vmatprep.subr.mxu0 %v23
  %339 = vmatpush1.msra.mxu0 %v22
  %340 = vmatprep.subr.mxu0 %v21
  %341 = vmatpush1.msra.mxu0 %v20
  %342 = vmatprep.subr.mxu0 %v19
  %343 = vmatpush1.msra.mxu0 %v18
  %344 = vmatprep.subr.mxu0 %v17
  %345 = vmatpush1.msra.mxu0 %v16
  %346 = vmatprep.subr.mxu0 0.0
  %347 = vmatpush2.msra.mxu0 0.0
  %348 = vmatprep.subr.mxu0 0.0
  %349 = vmatpush2.msra.mxu0 0.0
  %350 = vmatprep.subr.mxu0 0.0
  %351 = vmatpush2.msra.mxu0 0.0
  %352 = vmatprep.subr.mxu0 0.0
  %353 = vmatpush2.msra.mxu0 0.0
  %354 = vmatprep.subr.mxu0 0.0
  %355 = vmatpush2.msra.mxu0 0.0
  %356 = vmatprep.subr.mxu0 0.0
  %357 = vmatpush2.msra.mxu0 0.0
  %358 = vmatprep.subr.mxu0 0.0
  %359 = vmatpush2.msra.mxu0 0.0
  %360 = vmatprep.subr.mxu0 0.0
  %361 = vmatpush2.msra.mxu0 0.0
  %362 = vmatprep.subr.mxu0 0.0
  %363 = vmatpush2.msra.mxu0 0.0
  %364 = vmatprep.subr.mxu0 0.0
  %365 = vmatpush2.msra.mxu0 0.0
  %366 = vmatprep.subr.mxu0 0.0
  %367 = vmatpush2.msra.mxu0 0.0
  %368 = vmatprep.subr.mxu0 0.0
  %369 = vmatpush2.msra.mxu0 0.0
  %370 = vmatprep.subr.mxu0 0.0
  %371 = vmatpush2.msra.mxu0 0.0
  %372 = vmatprep.subr.mxu0 0.0
  %373 = vmatpush2.msra.mxu0 0.0
  %374 = vmatprep.subr.mxu0 0.0
  %375 = vmatpush2.msra.mxu0 0.0
  %376 = vmatprep.subr.mxu0 0.0
  %377 = vmatpush2.msra.mxu0 0.0
  %378 = vmatprep.mubr.f32.mxu0 0.0
  %379 = vmatmul.mubr.f32.gmra.mxu0 %v308
  %v380 = vpop.f32.mrf.mxu0
  %v381 = vadd.f32 0.0, %v380
  %v382 = vpop.f32.mrf.mxu0
  %v383 = vadd.f32 0.0, %v382
  %384 = vdwg.mxu0
  %v385 = vadd.f32 %v312, %v381
  %v386 = vadd.f32 %v313, %v383
  %v387 = vxor.u32 %v385, 2147483648
  %v388 = vmul.f32 %v387, 1.442695
  %v389 = vpow.pop %v388
  %v390 = vadd.f32 %v389, 1.0
  %v391 = vrcp.pop %v390
  %v392 = vmul.f32 1.0, %v391
  %v393 = vmax.f32 %v386, 0.0
  %v394 = vsub.f32 %v308, %v393
  %v395 = vmul.f32 %v392, %v394
  %v396 = vadd.f32 %v393, %v395
  %s397 = scalar_lea.vmem %s2, 24
  %398 = vst [vmem:[%s397] sm:$0xff] %v396
  %s399 = scalar_lea.vmem %s0, 64
  %v400 = vld [vmem:[%s399] sm:$0xff]
  %v401 = vld [vmem:[%s399 + $0x8] sm:$0xff]
  %402 = vmatprep.subr.mxu0 %v47
  %403 = vmatpush1.msra.mxu0 %v46
  %404 = vmatprep.subr.mxu0 %v45
  %405 = vmatpush1.msra.mxu0 %v44
  %406 = vmatprep.subr.mxu0 %v43
  %407 = vmatpush1.msra.mxu0 %v42
  %408 = vmatprep.subr.mxu0 %v41
  %409 = vmatpush1.msra.mxu0 %v40
  %410 = vmatprep.subr.mxu0 %v39
  %411 = vmatpush1.msra.mxu0 %v38
  %412 = vmatprep.subr.mxu0 %v37
  %413 = vmatpush1.msra.mxu0 %v36
  %414 = vmatprep.subr.mxu0 %v35
  %415 = vmatpush1.msra.mxu0 %v34
  %416 = vmatprep.subr.mxu0 %v33
  %417 = vmatpush1.msra.mxu0 %v32
  %418 = vmatprep.subr.mxu0 %v31
  %419 = vmatpush1.msra.mxu0 %v30
  %420 = vmatprep.subr.mxu0 %v29
  %421 = vmatpush1.msra.mxu0 %v28
  %422 = vmatprep.subr.mxu0 %v27
  %423 = vmatpush1.msra.mxu0 %v26
  %424 = vmatprep.subr.mxu0 %v25
  %425 = vmatpush1.msra.mxu0 %v24
  %426 = vmatprep.subr.mxu0 %v23
  %427 = vmatpush1.msra.mxu0 %v22
  %428 = vmatprep.subr.mxu0 %v21
  %429 = vmatpush1.msra.mxu0 %v20
  %430 = vmatprep.subr.mxu0 %v19
  %431 = vmatpush1.msra.mxu0 %v18
  %432 = vmatprep.subr.mxu0 %v17
  %433 = vmatpush1.msra.mxu0 %v16
  %434 = vmatprep.subr.mxu0 0.0
  %435 = vmatpush2.msra.mxu0 0.0
  %436 = vmatprep.subr.mxu0 0.0
  %437 = vmatpush2.msra.mxu0 0.0
  %438 = vmatprep.subr.mxu0 0.0
  %439 = vmatpush2.msra.mxu0 0.0
  %440 = vmatprep.subr.mxu0 0.0
  %441 = vmatpush2.msra.mxu0 0.0
  %442 = vmatprep.subr.mxu0 0.0
  %443 = vmatpush2.msra.mxu0 0.0
  %444 = vmatprep.subr.mxu0 0.0
  %445 = vmatpush2.msra.mxu0 0.0
  %446 = vmatprep.subr.mxu0 0.0
  %447 = vmatpush2.msra.mxu0 0.0
  %448 = vmatprep.subr.mxu0 0.0
  %449 = vmatpush2.msra.mxu0 0.0
  %450 = vmatprep.subr.mxu0 0.0
  %451 = vmatpush2.msra.mxu0 0.0
  %452 = vmatprep.subr.mxu0 0.0
  %453 = vmatpush2.msra.mxu0 0.0
  %454 = vmatprep.subr.mxu0 0.0
  %455 = vmatpush2.msra.mxu0 0.0
  %456 = vmatprep.subr.mxu0 0.0
  %457 = vmatpush2.msra.mxu0 0.0
  %458 = vmatprep.subr.mxu0 0.0
  %459 = vmatpush2.msra.mxu0 0.0
  %460 = vmatprep.subr.mxu0 0.0
  %461 = vmatpush2.msra.mxu0 0.0
  %462 = vmatprep.subr.mxu0 0.0
  %463 = vmatpush2.msra.mxu0 0.0
  %464 = vmatprep.subr.mxu0 0.0
  %465 = vmatpush2.msra.mxu0 0.0
  %466 = vmatprep.mubr.f32.mxu0 0.0
  %467 = vmatmul.mubr.f32.gmra.mxu0 %v396
  %v468 = vpop.f32.mrf.mxu0
  %v469 = vadd.f32 0.0, %v468
  %v470 = vpop.f32.mrf.mxu0
  %v471 = vadd.f32 0.0, %v470
  %472 = vdwg.mxu0
  %v473 = vadd.f32 %v400, %v469
  %v474 = vadd.f32 %v401, %v471
  %v475 = vxor.u32 %v473, 2147483648
  %v476 = vmul.f32 %v475, 1.442695
  %v477 = vpow.pop %v476
  %v478 = vadd.f32 %v477, 1.0
  %v479 = vrcp.pop %v478
  %v480 = vmul.f32 1.0, %v479
  %v481 = vmax.f32 %v474, 0.0
  %v482 = vsub.f32 %v396, %v481
  %v483 = vmul.f32 %v480, %v482
  %v484 = vadd.f32 %v481, %v483
  %s485 = scalar_lea.vmem %s2, 32
  %486 = vst [vmem:[%s485] sm:$0xff] %v484
  %s487 = scalar_lea.vmem %s0, 80
  %v488 = vld [vmem:[%s487] sm:$0xff]
  %v489 = vld [vmem:[%s487 + $0x8] sm:$0xff]
  %490 = vmatprep.subr.mxu0 %v47
  %491 = vmatpush1.msra.mxu0 %v46
  %492 = vmatprep.subr.mxu0 %v45
  %493 = vmatpush1.msra.mxu0 %v44
  %494 = vmatprep.subr.mxu0 %v43
  %495 = vmatpush1.msra.mxu0 %v42
  %496 = vmatprep.subr.mxu0 %v41
  %497 = vmatpush1.msra.mxu0 %v40
  %498 = vmatprep.subr.mxu0 %v39
  %499 = vmatpush1.msra.mxu0 %v38
  %500 = vmatprep.subr.mxu0 %v37
  %501 = vmatpush1.msra.mxu0 %v36
  %502 = vmatprep.subr.mxu0 %v35
  %503 = vmatpush1.msra.mxu0 %v34
  %504 = vmatprep.subr.mxu0 %v33
  %505 = vmatpush1.msra.mxu0 %v32
  %506 = vmatprep.subr.mxu0 %v31
  %507 = vmatpush1.msra.mxu0 %v30
  %508 = vmatprep.subr.mxu0 %v29
  %509 = vmatpush1.msra.mxu0 %v28
  %510 = vmatprep.subr.mxu0 %v27
  %511 = vmatpush1.msra.mxu0 %v26
  %512 = vmatprep.subr.mxu0 %v25
  %513 = vmatpush1.msra.mxu0 %v24
  %514 = vmatprep.subr.mxu0 %v23
  %515 = vmatpush1.msra.mxu0 %v22
  %516 = vmatprep.subr.mxu0 %v21
  %517 = vmatpush1.msra.mxu0 %v20
  %518 = vmatprep.subr.mxu0 %v19
  %519 = vmatpush1.msra.mxu0 %v18
  %520 = vmatprep.subr.mxu0 %v17
  %521 = vmatpush1.msra.mxu0 %v16
  %522 = vmatprep.subr.mxu0 0.0
  %523 = vmatpush2.msra.mxu0 0.0
  %524 = vmatprep.subr.mxu0 0.0
  %525 = vmatpush2.msra.mxu0 0.0
  %526 = vmatprep.subr.mxu0 0.0
  %527 = vmatpush2.msra.mxu0 0.0
  %528 = vmatprep.subr.mxu0 0.0
  %529 = vmatpush2.msra.mxu0 0.0
  %530 = vmatprep.subr.mxu0 0.0
  %531 = vmatpush2.msra.mxu0 0.0
  %532 = vmatprep.subr.mxu0 0.0
  %533 = vmatpush2.msra.mxu0 0.0
  %534 = vmatprep.subr.mxu0 0.0
  %535 = vmatpush2.msra.mxu0 0.0
  %536 = vmatprep.subr.mxu0 0.0
  %537 = vmatpush2.msra.mxu0 0.0
  %538 = vmatprep.subr.mxu0 0.0
  %539 = vmatpush2.msra.mxu0 0.0
  %540 = vmatprep.subr.mxu0 0.0
  %541 = vmatpush2.msra.mxu0 0.0
  %542 = vmatprep.subr.mxu0 0.0
  %543 = vmatpush2.msra.mxu0 0.0
  %544 = vmatprep.subr.mxu0 0.0
  %545 = vmatpush2.msra.mxu0 0.0
  %546 = vmatprep.subr.mxu0 0.0
  %547 = vmatpush2.msra.mxu0 0.0
  %548 = vmatprep.subr.mxu0 0.0
  %549 = vmatpush2.msra.mxu0 0.0
  %550 = vmatprep.subr.mxu0 0.0
  %551 = vmatpush2.msra.mxu0 0.0
  %552 = vmatprep.subr.mxu0 0.0
  %553 = vmatpush2.msra.mxu0 0.0
  %554 = vmatprep.mubr.f32.mxu0 0.0
  %555 = vmatmul.mubr.f32.gmra.mxu0 %v484
  %v556 = vpop.f32.mrf.mxu0
  %v557 = vadd.f32 0.0, %v556
  %v558 = vpop.f32.mrf.mxu0
  %v559 = vadd.f32 0.0, %v558
  %560 = vdwg.mxu0
  %v561 = vadd.f32 %v488, %v557
  %v562 = vadd.f32 %v489, %v559
  %v563 = vxor.u32 %v561, 2147483648
  %v564 = vmul.f32 %v563, 1.442695
  %v565 = vpow.pop %v564
  %v566 = vadd.f32 %v565, 1.0
  %v567 = vrcp.pop %v566
  %v568 = vmul.f32 1.0, %v567
  %v569 = vmax.f32 %v562, 0.0
  %v570 = vsub.f32 %v484, %v569
  %v571 = vmul.f32 %v568, %v570
  %v572 = vadd.f32 %v569, %v571
  %s573 = scalar_lea.vmem %s2, 40
  %574 = vst [vmem:[%s573] sm:$0xff] %v572
  %s575 = scalar_lea.vmem %s0, 96
  %v576 = vld [vmem:[%s575] sm:$0xff]
  %v577 = vld [vmem:[%s575 + $0x8] sm:$0xff]
  %578 = vmatprep.subr.mxu0 %v47
  %579 = vmatpush1.msra.mxu0 %v46
  %580 = vmatprep.subr.mxu0 %v45
  %581 = vmatpush1.msra.mxu0 %v44
  %582 = vmatprep.subr.mxu0 %v43
  %583 = vmatpush1.msra.mxu0 %v42
  %584 = vmatprep.subr.mxu0 %v41
  %585 = vmatpush1.msra.mxu0 %v40
  %586 = vmatprep.subr.mxu0 %v39
  %587 = vmatpush1.msra.mxu0 %v38
  %588 = vmatprep.subr.mxu0 %v37
  %589 = vmatpush1.msra.mxu0 %v36
  %590 = vmatprep.subr.mxu0 %v35
  %591 = vmatpush1.msra.mxu0 %v34
  %592 = vmatprep.subr.mxu0 %v33
  %593 = vmatpush1.msra.mxu0 %v32
  %594 = vmatprep.subr.mxu0 %v31
  %595 = vmatpush1.msra.mxu0 %v30
  %596 = vmatprep.subr.mxu0 %v29
  %597 = vmatpush1.msra.mxu0 %v28
  %598 = vmatprep.subr.mxu0 %v27
  %599 = vmatpush1.msra.mxu0 %v26
  %600 = vmatprep.subr.mxu0 %v25
  %601 = vmatpush1.msra.mxu0 %v24
  %602 = vmatprep.subr.mxu0 %v23
  %603 = vmatpush1.msra.mxu0 %v22
  %604 = vmatprep.subr.mxu0 %v21
  %605 = vmatpush1.msra.mxu0 %v20
  %606 = vmatprep.subr.mxu0 %v19
  %607 = vmatpush1.msra.mxu0 %v18
  %608 = vmatprep.subr.mxu0 %v17
  %609 = vmatpush1.msra.mxu0 %v16
  %610 = vmatprep.subr.mxu0 0.0
  %611 = vmatpush2.msra.mxu0 0.0
  %612 = vmatprep.subr.mxu0 0.0
  %613 = vmatpush2.msra.mxu0 0.0
  %614 = vmatprep.subr.mxu0 0.0
  %615 = vmatpush2.msra.mxu0 0.0
  %616 = vmatprep.subr.mxu0 0.0
  %617 = vmatpush2.msra.mxu0 0.0
  %618 = vmatprep.subr.mxu0 0.0
  %619 = vmatpush2.msra.mxu0 0.0
  %620 = vmatprep.subr.mxu0 0.0
  %621 = vmatpush2.msra.mxu0 0.0
  %622 = vmatprep.subr.mxu0 0.0
  %623 = vmatpush2.msra.mxu0 0.0
  %624 = vmatprep.subr.mxu0 0.0
  %625 = vmatpush2.msra.mxu0 0.0
  %626 = vmatprep.subr.mxu0 0.0
  %627 = vmatpush2.msra.mxu0 0.0
  %628 = vmatprep.subr.mxu0 0.0
  %629 = vmatpush2.msra.mxu0 0.0
  %630 = vmatprep.subr.mxu0 0.0
  %631 = vmatpush2.msra.mxu0 0.0
  %632 = vmatprep.subr.mxu0 0.0
  %633 = vmatpush2.msra.mxu0 0.0
  %634 = vmatprep.subr.mxu0 0.0
  %635 = vmatpush2.msra.mxu0 0.0
  %636 = vmatprep.subr.mxu0 0.0
  %637 = vmatpush2.msra.mxu0 0.0
  %638 = vmatprep.subr.mxu0 0.0
  %639 = vmatpush2.msra.mxu0 0.0
  %640 = vmatprep.subr.mxu0 0.0
  %641 = vmatpush2.msra.mxu0 0.0
  %642 = vmatprep.mubr.f32.mxu0 0.0
  %643 = vmatmul.mubr.f32.gmra.mxu0 %v572
  %v644 = vpop.f32.mrf.mxu0
  %v645 = vadd.f32 0.0, %v644
  %v646 = vpop.f32.mrf.mxu0
  %v647 = vadd.f32 0.0, %v646
  %648 = vdwg.mxu0
  %v649 = vadd.f32 %v576, %v645
  %v650 = vadd.f32 %v577, %v647
  %v651 = vxor.u32 %v649, 2147483648
  %v652 = vmul.f32 %v651, 1.442695
  %v653 = vpow.pop %v652
  %v654 = vadd.f32 %v653, 1.0
  %v655 = vrcp.pop %v654
  %v656 = vmul.f32 1.0, %v655
  %v657 = vmax.f32 %v650, 0.0
  %v658 = vsub.f32 %v572, %v657
  %v659 = vmul.f32 %v656, %v658
  %v660 = vadd.f32 %v657, %v659
  %s661 = scalar_lea.vmem %s2, 48
  %662 = vst [vmem:[%s661] sm:$0xff] %v660
  %s663 = scalar_lea.vmem %s0, 112
  %v664 = vld [vmem:[%s663] sm:$0xff]
  %v665 = vld [vmem:[%s663 + $0x8] sm:$0xff]
  %666 = vmatprep.subr.mxu0 %v47
  %667 = vmatpush1.msra.mxu0 %v46
  %668 = vmatprep.subr.mxu0 %v45
  %669 = vmatpush1.msra.mxu0 %v44
  %670 = vmatprep.subr.mxu0 %v43
  %671 = vmatpush1.msra.mxu0 %v42
  %672 = vmatprep.subr.mxu0 %v41
  %673 = vmatpush1.msra.mxu0 %v40
  %674 = vmatprep.subr.mxu0 %v39
  %675 = vmatpush1.msra.mxu0 %v38
  %676 = vmatprep.subr.mxu0 %v37
  %677 = vmatpush1.msra.mxu0 %v36
  %678 = vmatprep.subr.mxu0 %v35
  %679 = vmatpush1.msra.mxu0 %v34
  %680 = vmatprep.subr.mxu0 %v33
  %681 = vmatpush1.msra.mxu0 %v32
  %682 = vmatprep.subr.mxu0 %v31
  %683 = vmatpush1.msra.mxu0 %v30
  %684 = vmatprep.subr.mxu0 %v29
  %685 = vmatpush1.msra.mxu0 %v28
  %686 = vmatprep.subr.mxu0 %v27
  %687 = vmatpush1.msra.mxu0 %v26
  %688 = vmatprep.subr.mxu0 %v25
  %689 = vmatpush1.msra.mxu0 %v24
  %690 = vmatprep.subr.mxu0 %v23
  %691 = vmatpush1.msra.mxu0 %v22
  %692 = vmatprep.subr.mxu0 %v21
  %693 = vmatpush1.msra.mxu0 %v20
  %694 = vmatprep.subr.mxu0 %v19
  %695 = vmatpush1.msra.mxu0 %v18
  %696 = vmatprep.subr.mxu0 %v17
  %697 = vmatpush1.msra.mxu0 %v16
  %698 = vmatprep.subr.mxu0 0.0
  %699 = vmatpush2.msra.mxu0 0.0
  %700 = vmatprep.subr.mxu0 0.0
  %701 = vmatpush2.msra.mxu0 0.0
  %702 = vmatprep.subr.mxu0 0.0
  %703 = vmatpush2.msra.mxu0 0.0
  %704 = vmatprep.subr.mxu0 0.0
  %705 = vmatpush2.msra.mxu0 0.0
  %706 = vmatprep.subr.mxu0 0.0
  %707 = vmatpush2.msra.mxu0 0.0
  %708 = vmatprep.subr.mxu0 0.0
  %709 = vmatpush2.msra.mxu0 0.0
  %710 = vmatprep.subr.mxu0 0.0
  %711 = vmatpush2.msra.mxu0 0.0
  %712 = vmatprep.subr.mxu0 0.0
  %713 = vmatpush2.msra.mxu0 0.0
  %714 = vmatprep.subr.mxu0 0.0
  %715 = vmatpush2.msra.mxu0 0.0
  %716 = vmatprep.subr.mxu0 0.0
  %717 = vmatpush2.msra.mxu0 0.0
  %718 = vmatprep.subr.mxu0 0.0
  %719 = vmatpush2.msra.mxu0 0.0
  %720 = vmatprep.subr.mxu0 0.0
  %721 = vmatpush2.msra.mxu0 0.0
  %722 = vmatprep.subr.mxu0 0.0
  %723 = vmatpush2.msra.mxu0 0.0
  %724 = vmatprep.subr.mxu0 0.0
  %725 = vmatpush2.msra.mxu0 0.0
  %726 = vmatprep.subr.mxu0 0.0
  %727 = vmatpush2.msra.mxu0 0.0
  %728 = vmatprep.subr.mxu0 0.0
  %729 = vmatpush2.msra.mxu0 0.0
  %730 = vmatprep.mubr.f32.mxu0 0.0
  %731 = vmatmul.mubr.f32.gmra.mxu0 %v660
  %v732 = vpop.f32.mrf.mxu0
  %v733 = vadd.f32 0.0, %v732
  %v734 = vpop.f32.mrf.mxu0
  %v735 = vadd.f32 0.0, %v734
  %736 = vdwg.mxu0
  %v737 = vadd.f32 %v664, %v733
  %v738 = vadd.f32 %v665, %v735
  %v739 = vxor.u32 %v737, 2147483648
  %v740 = vmul.f32 %v739, 1.442695
  %v741 = vpow.pop %v740
  %v742 = vadd.f32 %v741, 1.0
  %v743 = vrcp.pop %v742
  %v744 = vmul.f32 1.0, %v743
  %v745 = vmax.f32 %v738, 0.0
  %v746 = vsub.f32 %v660, %v745
  %v747 = vmul.f32 %v744, %v746
  %v748 = vadd.f32 %v745, %v747
  %s749 = scalar_lea.vmem %s2, 56
  %750 = vst [vmem:[%s749] sm:$0xff] %v748
  %751 = vst [vmem:[#allocation2] sm:$0xff] %v748
  // Predicated region
  $region14: #{light_gru_forward.1} parent=0 // pred_check
    _
  $region15: #{light_gru_forward.1} parent=0 // pred_check_branch
    %753 = sbr.rel (0) target = $region17
  $region16: #{light_gru_forward.1} parent=0 // pred_region
    _
  $region17: #{light_gru_forward.1} parent=0 // pred_fallthru
    _
  // Predicated region
  $region18: #{light_gru_forward.1} parent=0 // pred_check
    _
  $region19: #{light_gru_forward.1} parent=0 // pred_check_branch
    %755 = sbr.rel (0) target = $region21
  $region20: #{light_gru_forward.1} parent=0 // pred_region
    _
  $region21: #{light_gru_forward.1} parent=0 // pred_fallthru
    _

</llo_original>
